<compile_context>
chip_gen: v7x
topology: tpu7x:2x2x1
jax: 0.10.0
libtpu: 0.0.40
codegen_flags: <defaults>
</compile_context>

<pallas_src>
import math

import jax
import jax.numpy as jnp
from jax.experimental import pallas as pl
from jax.experimental.pallas import tpu as pltpu

LANE = 128
_TARGET_TILE_BYTES = 4 << 20      # ~4 MiB x-tile: amortize ~0.35 us per-step overhead
_MIN_GRID_STEPS = 8               # give v7x's 2 TensorCores something to split
_SPLIT_THRESHOLD_BYTES = 1 << 20  # don't bother splitting tiny problems


def build_pe(seq_len: int, d_model: int, dtype=jnp.float32) -> jnp.ndarray:
    """Deterministic sinusoidal positional-encoding buffer, shape (1, S, D)."""
    position = jnp.arange(seq_len, dtype=jnp.float32)[:, None]            # (S, 1)
    div_term = jnp.exp(
        jnp.arange(0, d_model, 2, dtype=jnp.float32)
        * (-math.log(10000.0) / d_model)
    )                                                                     # (ceil(D/2),)
    sin = jnp.sin(position * div_term)
    cos = jnp.cos(position * div_term)
    pe = jnp.zeros((seq_len, d_model), dtype=jnp.float32)
    pe = pe.at[:, 0::2].set(sin)
    pe = pe.at[:, 1::2].set(cos[:, : d_model // 2])   # robust to odd d_model
    return pe[None, :, :].astype(dtype)               # (1, S, D)


def _add_pe_kernel(x_ref, pe_ref, o_ref):
    # Elementwise VPU add; pe broadcasts over the leading (batch) dim(s).
    o_ref[...] = (x_ref[...] + pe_ref[...]).astype(o_ref.dtype)


def positional_encoding_forward(x: jnp.ndarray, pe: jnp.ndarray,
                                *, donate_x: bool = False,
                                target_bytes: int = _TARGET_TILE_BYTES) -> jnp.ndarray:
    """out = x + pe (broadcast over batch); dropout in eval mode == identity.

    x:  (B, S, D)
    pe: (1, S_pe, D) or (S_pe, D) with S_pe >= S.  For best perf pre-slice and
        pre-cast pe once at model init (as done in __main__).
    """
    B, S, D = x.shape
    if pe.ndim == 3:
        pe = pe[0]
    if pe.shape[0] != S:          # mirrors self.pe[:, :x.size(1), :]
        pe = pe[:S]
    if pe.dtype != x.dtype:
        pe = pe.astype(x.dtype)

    cols = S * D
    itemsize = x.dtype.itemsize
    row_bytes = cols * itemsize
    total_bytes = B * row_bytes

    if cols % LANE == 0:
        P = cols // LANE
        x_in = x.reshape(B, P, LANE)          # lane- and sublane-dense slab
        pe_in = pe.reshape(P, LANE)

        if row_bytes <= target_bytes:
            # --- Case 1: whole per-batch PE slab fits in one tile -----------
            # pe block index is constant -> DMA'd from HBM exactly once and
            # kept resident; x/out tiles are fully contiguous tb*S*D chunks.
            tb = max(1, min(B, target_bytes // row_bytes))
            if total_bytes > _SPLIT_THRESHOLD_BYTES:
                tb = min(tb, max(1, pl.cdiv(B, _MIN_GRID_STEPS)))
            grid = (pl.cdiv(B, tb),)
            in_specs = [
                pl.BlockSpec((tb, P, LANE), lambda b: (b, 0, 0)),
                pl.BlockSpec((P, LANE), lambda b: (0, 0)),
            ]
            out_specs = pl.BlockSpec((tb, P, LANE), lambda b: (b, 0, 0))
            dim_sem = ("parallel",)
            x_tile_bytes = tb * row_bytes
            pe_tile_bytes = row_bytes
        else:
            # --- Case 2: long sequences; tile the flattened (S*D) axis ------
            # Grid = (pe_block, batch) with batch innermost so each pe block is
            # DMA'd once and reused across all batch rows.
            tp = max(8, (target_bytes // (LANE * itemsize)) // 8 * 8)
            tp = min(tp, P)
            grid = (pl.cdiv(P, tp), B)
            in_specs = [
                pl.BlockSpec((1, tp, LANE), lambda j, b: (b, j, 0)),
                pl.BlockSpec((tp, LANE), lambda j, b: (j, 0)),
            ]
            out_specs = pl.BlockSpec((1, tp, LANE), lambda j, b: (b, j, 0))
            dim_sem = ("parallel", "parallel")
            x_tile_bytes = tp * LANE * itemsize
            pe_tile_bytes = x_tile_bytes
    else:
        # --- Fallback: S*D not a lane multiple ------------------------------
        # Full-extent last dim (always legal); tile over batch rows only.
        # TODO(synk): for very large non-128-aligned rows, pad D to a lane
        #             multiple instead of relying on a raised VMEM limit.
        x_in = x.reshape(B, cols)
        pe_in = pe.reshape(1, cols)
        tb = max(1, min(B, target_bytes // max(row_bytes, 1)))
        if total_bytes > _SPLIT_THRESHOLD_BYTES:
            tb = min(tb, max(1, pl.cdiv(B, _MIN_GRID_STEPS)))
        if tb < B:
            tb = min(B, ((tb + 7) // 8) * 8)   # sublane dim: multiple of 8 or full
        grid = (pl.cdiv(B, tb),)
        in_specs = [
            pl.BlockSpec((tb, cols), lambda b: (b, 0)),
            pl.BlockSpec((1, cols), lambda b: (0, 0)),
        ]
        out_specs = pl.BlockSpec((tb, cols), lambda b: (b, 0))
        dim_sem = ("parallel",)
        x_tile_bytes = tb * row_bytes
        pe_tile_bytes = row_bytes

    # Double-buffered x + out tiles plus pe, with slack.  >=32 MiB so 4 MiB
    # tiles clear v5e's 16 MiB scoped default; <=48 MiB stays within v7x's
    # 64 MiB physical VMEM (v5e/v6e have 128 MiB physical).
    vmem_needed = 2 * (2 * x_tile_bytes + pe_tile_bytes) + (2 << 20)
    vmem_limit = int(min(max(32 << 20, vmem_needed), 48 << 20))

    out = pl.pallas_call(
        _add_pe_kernel,
        out_shape=jax.ShapeDtypeStruct(x_in.shape, x.dtype),
        grid=grid,
        in_specs=in_specs,
        out_specs=out_specs,
        compiler_params=pltpu.CompilerParams(
            dimension_semantics=dim_sem,
            vmem_limit_bytes=vmem_limit,
        ),
        input_output_aliases=({0: 0} if donate_x else {}),
        cost_estimate=pl.CostEstimate(
            flops=B * cols,
            transcendentals=0,
            bytes_accessed=(2 * B + 1) * row_bytes,   # read x, read pe once, write out
        ),
    )(x_in, pe_in)

    return out.reshape(B, S, D)


if __name__ == "__main__":
    # Module hyper-parameters (deterministic, in-script).
    d_model = 32
    seq_len = 16      # PE table length
    dropout_p = 0.1   # unused: eval-mode dropout == identity

    batch = 2
    cur_seq = 8       # x.size(1) <= seq_len, exercises the pe[:, :S, :] slice

    key = jax.random.PRNGKey(0)
    x = jax.random.normal(key, (batch, cur_seq, d_model), dtype=jnp.float32)

    pe_full = build_pe(seq_len, d_model)                     # (1, seq_len, D)
    pe_sliced = pe_full[:, :cur_seq, :].astype(x.dtype)      # hoisted out of hot path

    out = positional_encoding_forward(x, pe_sliced)
    out = jax.block_until_ready(out)

    # Reference check in plain JAX (eval-mode dropout == identity).
    ref = x + pe_full[:, :cur_seq, :]
    assert out.shape == (batch, cur_seq, d_model)
    assert jnp.allclose(out, ref, atol=1e-6), "mismatch vs reference (main path)"

    # Also exercise the non-lane-aligned fallback path (S*D % 128 != 0).
    b2, s2, d2 = 3, 5, 24
    x2 = jax.random.normal(jax.random.PRNGKey(1), (b2, s2, d2), dtype=jnp.float32)
    pe2 = build_pe(s2, d2)
    out2 = jax.block_until_ready(positional_encoding_forward(x2, pe2))
    assert jnp.allclose(out2, x2 + pe2, atol=1e-6), "mismatch vs reference (fallback)"

    print("KERNEL_OK")
</pallas_src>

<mosaic_0001>
module attributes {stable_mosaic.version = 11 : i64} {
  func.func @_add_pe_kernel(%arg0: i32, %arg1: memref<2x2x128xf32, #tpu.memory_space<vmem>>, %arg2: memref<2x128xf32, #tpu.memory_space<vmem>>, %arg3: memref<2x2x128xf32, #tpu.memory_space<vmem>>) attributes {dimension_semantics = [#tpu.dimension_semantics<parallel>], iteration_bounds = array<i64: 1>, scalar_prefetch = 0 : i64, scratch_operands = 0 : i64, tpu.core_type = #tpu.core_type<tc>, window_params = [{transform_indices = @transform_0, window_bounds = array<i64: 2, 2, 128>}, {pipeline_mode = #tpu.pipeline_mode<synchronous>, transform_indices = @transform_1, window_bounds = array<i64: 2, 128>}, {transform_indices = @transform_2, window_bounds = array<i64: 2, 2, 128>}]} {
    %c0 = arith.constant 0 : index
    %c0_0 = arith.constant 0 : index
    %c0_1 = arith.constant 0 : index
    %0 = vector.load %arg1[%c0, %c0_0, %c0_1] : memref<2x2x128xf32, #tpu.memory_space<vmem>>, vector<2x2x128xf32>
    %c0_2 = arith.constant 0 : index
    %c0_3 = arith.constant 0 : index
    %1 = vector.load %arg2[%c0_2, %c0_3] : memref<2x128xf32, #tpu.memory_space<vmem>>, vector<2x128xf32>
    %2 = vector.shape_cast %1 : vector<2x128xf32> to vector<1x2x128xf32>
    %3 = vector.broadcast %2 : vector<1x2x128xf32> to vector<2x2x128xf32>
    %4 = arith.addf %0, %3 : vector<2x2x128xf32>
    %c0_4 = arith.constant 0 : index
    %c0_5 = arith.constant 0 : index
    %c0_6 = arith.constant 0 : index
    %5 = vector.load %arg3[%c0_4, %c0_5, %c0_6] : memref<2x2x128xf32, #tpu.memory_space<vmem>>, vector<2x2x128xf32>
    tpu.vector_store %arg3[%c0_4, %c0_5, %c0_6], %4 {strides = array<i32>} : memref<2x2x128xf32, #tpu.memory_space<vmem>>, vector<2x2x128xf32>,
    return
  }
  func.func @transform_0(%arg0: i32) -> (i32, i32, i32) {
    %c0_i32 = arith.constant 0 : i32
    %c0_i32_0 = arith.constant 0 : i32
    %c0_i32_1 = arith.constant 0 : i32
    return %arg0, %c0_i32, %c0_i32_0 : i32, i32, i32
  }
  func.func @transform_1(%arg0: i32) -> (i32, i32) {
    %c0_i32 = arith.constant 0 : i32
    %c0_i32_0 = arith.constant 0 : i32
    %c0_i32_1 = arith.constant 0 : i32
    return %c0_i32, %c0_i32_0 : i32, i32
  }
  func.func @transform_2(%arg0: i32) -> (i32, i32, i32) {
    %c0_i32 = arith.constant 0 : i32
    %c0_i32_0 = arith.constant 0 : i32
    %c0_i32_1 = arith.constant 0 : i32
    return %arg0, %c0_i32, %c0_i32_0 : i32, i32, i32
  }
}

</mosaic_0001>

<llo_original>
// kernel: tpu_custom_call.1
$region0: #{tpu_custom_call.1}
  #allocation0 [shape = 'u32[]', space=smem, size = 0x4, offset = 0x4, fixed_abs, tag = 'smem constant byte address 0x4 - core index']
  #allocation1 [shape = 'u32[144,128]{1,0:T(1,128)}', space=vmem, size = 0x12000, scoped, tag = 'internal scratch']
  %s0 = inlined_call_operand.hbm [shape: f32[2,2,128], index: 0, kind: input, shape index: {}]
  %s1 = inlined_call_operand.vmem [shape: f32[2,128], index: 1, kind: input, shape index: {}]
  %s2 = inlined_call_operand.hbm [shape: f32[2,2,128], index: 2, kind: output, shape index: {}]
  %s3 = sld [smem:[#allocation0]]
  $region22: #{tpu_custom_call.1} parent=0
    _
  %s5 = ssub.s32 1, %s3
  %s6 = scalar_select 0, %s5, %s3
  $region1: #{tpu_custom_call.1} parent=0
    #allocation2 [shape = 'u8[2048]{0}', space=vmem, size = 0x800, scoped, tag = 'input window, operand 0, single buffered']
    #allocation3 [shape = 's32[1]{0}', space=sflag, size = 0x4, scoped, tag = 'scoped memory for tpu_custom_call.1']
    #allocation4 [shape = 's32[1]{0}', space=sflag, size = 0x4, scoped, tag = 'scoped memory for tpu_custom_call.1']
    #allocation5 [shape = 'u8[2048]{0}', space=vmem, size = 0x800, scoped, tag = 'output window, operand 0, single buffered']
    %7 = vsyncpa [#allocation3], 0
    %8 = vsyncpa [#allocation4], 0
    // Predicated region
    $region2: #{tpu_custom_call.1} parent=1 // pred_check
      _
    $region3: #{tpu_custom_call.1} parent=1 // pred_check_branch
      %10 = sbr.rel (0) target = $region5
    $region4: #{tpu_custom_call.1} parent=1 // pred_region
      %s12 = ssub.s32 64, 64
      %13 = vsyncadd [#allocation3], %s12
      %s14 = sshll.u32 [#allocation2], 4
      %s15 = int_to_ptr.vmem [resolvable:$true] %s14
      %20 = dma.hbm_to_vmem [thread:$0]  %s0, 64, %s15, [#allocation3], 32, 32, 2
    $region5: #{tpu_custom_call.1} parent=1 // pred_fallthru
      _
    // Predicated region
    $region6: #{tpu_custom_call.1} parent=1 // pred_check
      _
    $region7: #{tpu_custom_call.1} parent=1 // pred_check_branch
      %22 = sbr.rel (0) target = $region9
    $region8: #{tpu_custom_call.1} parent=1 // pred_region
      _
    $region9: #{tpu_custom_call.1} parent=1 // pred_fallthru
      _
    // Predicated region
    $region10: #{tpu_custom_call.1} parent=1 // pred_check
      _
    $region11: #{tpu_custom_call.1} parent=1 // pred_check_branch
      %24 = sbr.rel (0) target = $region13
    $region12: #{tpu_custom_call.1} parent=1 // pred_region
      %25 = dma.done [#allocation3], 64
    $region13: #{tpu_custom_call.1} parent=1 // pred_fallthru
      _
    %v26 = vld [vmem:[#allocation2] sm:$0x3]
    %v27 = vld [vmem:[#allocation2 + $0x2] sm:$0x3]
    %v28 = vld [vmem:[%s1] sm:$0x3]
    %v29 = vadd.f32 %v26, %v28
    %v30 = vadd.f32 %v27, %v28
    %31 = vst [vmem:[#allocation5] sm:$0x3] %v29
    %32 = vst [vmem:[#allocation5 + $0x2] sm:$0x3] %v30
    // Predicated region
    $region14: #{tpu_custom_call.1} parent=1 // pred_check
      _
    $region15: #{tpu_custom_call.1} parent=1 // pred_check_branch
      %34 = sbr.rel (0) target = $region17
    $region16: #{tpu_custom_call.1} parent=1 // pred_region
      %s36 = ssub.s32 64, 64
      %37 = vsyncadd [#allocation4], %s36
      %s38 = sshll.u32 [#allocation5], 4
      %s39 = int_to_ptr.vmem [resolvable:$true] %s38
      %44 = dma.vmem_to_hbm [thread:$0]  %s39, 64, %s2, [#allocation4], 32, 32, 2
    $region17: #{tpu_custom_call.1} parent=1 // pred_fallthru
      _
    // Predicated region
    $region18: #{tpu_custom_call.1} parent=1 // pred_check
      _
    $region19: #{tpu_custom_call.1} parent=1 // pred_check_branch
      %46 = sbr.rel (0) target = $region21
    $region20: #{tpu_custom_call.1} parent=1 // pred_region
      %47 = dma.done [#allocation4], 64
    $region21: #{tpu_custom_call.1} parent=1 // pred_fallthru
      _
    %48 = vsyncpa [#allocation3], 1
    %49 = vsyncpa [#allocation4], 1

</llo_original>
